<compile_context>
chip_gen: v7x
topology: tpu7x:2x2x1
jax: 0.10.0
libtpu: 0.0.40
codegen_flags: <defaults>
</compile_context>

<pallas_src>
import functools

import jax
import jax.numpy as jnp
from jax.experimental import pallas as pl
from jax.experimental.pallas import tpu as pltpu


# ----------------------------------------------------------------------------
# Single fused kernel: whole TemporalBlock forward for one batch element.
# ----------------------------------------------------------------------------
def _temporal_block_kernel(*refs, K, dilation, padding, pad_left, has_downsample):
    """refs (has_downsample=True):
        x_ref (1,Cin,L), w1_ref (K,Cout,Cin), b1_ref (Cout,1), pv1_ref (Cout,1),
        w2_ref (K,Cout,Cout), b2_ref (Cout,1), pv2_ref (Cout,1),
        wd_ref (1,Cout,Cin), bd_ref (Cout,1), o_ref (1,Cout,L2)
    refs (has_downsample=False): same without wd_ref/bd_ref (Cin == Cout, identity res).
    """
    if has_downsample:
        (x_ref, w1_ref, b1_ref, pv1_ref, w2_ref, b2_ref, pv2_ref,
         wd_ref, bd_ref, o_ref) = refs
    else:
        (x_ref, w1_ref, b1_ref, pv1_ref, w2_ref, b2_ref, pv2_ref, o_ref) = refs

    x = x_ref[0]                                     # (Cin, L), native dtype
    Cin, L = x.shape
    Cout = w1_ref.shape[1]
    d, p = dilation, padding

    # --- conv1 (BN1 folded) + ReLU -------------------------------------------
    zin = jnp.zeros((Cin, p), x.dtype)
    xp = jnp.concatenate([zin, x, zin], axis=1) if p > 0 else x     # (Cin, L + 2p)
    Lout1 = L + 2 * p - d * (K - 1)
    acc1 = jnp.zeros((Cout, Lout1), jnp.float32)
    for k in range(K):                               # K tiny & static -> unrolled taps
        acc1 = acc1 + jnp.dot(w1_ref[k], xp[:, k * d:k * d + Lout1],
                              preferred_element_type=jnp.float32)
    y1 = jnp.maximum(acc1 + b1_ref[...], 0.0)        # (Cout, Lout1)

    # chomp1 columns after eval-BN + ReLU become relu(beta - mean*scale), not zero.
    if pad_left > 0:
        act1 = jnp.concatenate(
            [jnp.broadcast_to(pv1_ref[...], (Cout, pad_left)), y1], axis=1)
    else:
        act1 = y1
    L1 = pad_left + Lout1

    # --- conv2 (BN2 folded) + ReLU -------------------------------------------
    a1 = act1.astype(w2_ref.dtype)
    zmid = jnp.zeros((Cout, p), a1.dtype)
    a1p = jnp.concatenate([zmid, a1, zmid], axis=1) if p > 0 else a1  # (Cout, L1 + 2p)
    Lout2 = L1 + 2 * p - d * (K - 1)
    acc2 = jnp.zeros((Cout, Lout2), jnp.float32)
    for k in range(K):
        acc2 = acc2 + jnp.dot(w2_ref[k], a1p[:, k * d:k * d + Lout2],
                              preferred_element_type=jnp.float32)
    y2 = jnp.maximum(acc2 + b2_ref[...], 0.0)        # (Cout, Lout2)
    if pad_left > 0:
        out = jnp.concatenate(
            [jnp.broadcast_to(pv2_ref[...], (Cout, pad_left)), y2], axis=1)
    else:
        out = y2
    L2 = pad_left + Lout2

    # --- residual branch + PyTorch-style length match + final ReLU -----------
    if has_downsample:
        res = jnp.dot(wd_ref[0], x, preferred_element_type=jnp.float32) + bd_ref[...]
    else:
        res = x.astype(jnp.float32)                  # identity residual (Cin == Cout)
    Lr = res.shape[1]
    if Lr > L2:
        res = res[:, :L2]
    elif Lr < L2:
        res = jnp.concatenate([res, jnp.zeros((Cout, L2 - Lr), jnp.float32)], axis=1)

    o_ref[0] = jnp.maximum(out + res, 0.0).astype(o_ref.dtype)   # one lane-dense store


# ----------------------------------------------------------------------------
# Wrapper: BN folding + single pallas_call for the whole block
# ----------------------------------------------------------------------------
def _fold_bn(w, b, gamma, beta, mean, var, eps):
    """Fold eval-mode BatchNorm1d into conv weights/bias. Returns (K,Cout,Cin) weights,
    folded bias, and the per-channel value the chomp's zero columns take after BN+ReLU."""
    scale = gamma / jnp.sqrt(var + eps)                 # (Cout,)
    w_f = (w * scale[:, None, None]).astype(w.dtype)    # (Cout, Cin, K)
    b_f = (b - mean) * scale + beta
    pad_val = jnp.maximum(beta - mean * scale, 0.0)     # relu(BN shift)
    return jnp.transpose(w_f, (2, 0, 1)), b_f, pad_val  # (K, Cout, Cin)


def temporal_block_forward(x, params, *, kernel_size, stride, dilation, padding,
                           eps=1e-5):
    """Forward pass of TemporalBlock (inference mode)."""
    assert stride == 1, "TODO(synk): stride > 1 not implemented (canonical TCN uses 1)"
    PL = padding - dilation
    assert PL >= 0, "requires padding >= dilation (canonical: padding=(K-1)*dilation)"

    N, Cin, L = x.shape
    Cout, _, K = params["w1"].shape
    assert K == kernel_size

    w1, b1, pv1 = _fold_bn(params["w1"], params["b1"], params["g1"], params["be1"],
                           params["rm1"], params["rv1"], eps)
    w2, b2, pv2 = _fold_bn(params["w2"], params["b2"], params["g2"], params["be2"],
                           params["rm2"], params["rv2"], eps)

    Lout1 = L + 2 * padding - dilation * (K - 1)
    L1 = PL + Lout1
    Lout2 = L1 + 2 * padding - dilation * (K - 1)
    L2 = PL + Lout2

    has_downsample = params.get("wd") is not None
    if not has_downsample:
        assert Cin == Cout, "identity residual requires n_inputs == n_outputs"

    kernel = functools.partial(
        _temporal_block_kernel, K=K, dilation=dilation, padding=padding,
        pad_left=PL, has_downsample=has_downsample)

    def col(v):  # per-channel vectors as (Cout, 1) f32 columns
        return v.reshape(Cout, 1).astype(jnp.float32)

    in_specs = [
        pl.BlockSpec((1, Cin, L), lambda n: (n, 0, 0)),
        pl.BlockSpec((K, Cout, Cin), lambda n: (0, 0, 0)),    # weights stay resident
        pl.BlockSpec((Cout, 1), lambda n: (0, 0)),
        pl.BlockSpec((Cout, 1), lambda n: (0, 0)),
        pl.BlockSpec((K, Cout, Cout), lambda n: (0, 0, 0)),
        pl.BlockSpec((Cout, 1), lambda n: (0, 0)),
        pl.BlockSpec((Cout, 1), lambda n: (0, 0)),
    ]
    args = [x, w1, col(b1), col(pv1), w2, col(b2), col(pv2)]
    if has_downsample:
        wd = jnp.transpose(params["wd"], (2, 0, 1))           # (1, Cout, Cin)
        in_specs += [pl.BlockSpec((1, Cout, Cin), lambda n: (0, 0, 0)),
                     pl.BlockSpec((Cout, 1), lambda n: (0, 0))]
        args += [wd, col(params["bd"])]

    return pl.pallas_call(
        kernel,
        out_shape=jax.ShapeDtypeStruct((N, Cout, L2), x.dtype),
        grid=(N,),
        in_specs=in_specs,
        out_specs=pl.BlockSpec((1, Cout, L2), lambda n: (n, 0, 0)),
        compiler_params=pltpu.CompilerParams(dimension_semantics=("parallel",)),
    )(*args)


# ----------------------------------------------------------------------------
# Pure-JAX reference (PyTorch semantics) for correctness checking
# ----------------------------------------------------------------------------
def _conv1d_ref(x, w, b, *, stride, padding, dilation):
    out = jax.lax.conv_general_dilated(
        x, w, window_strides=(stride,), padding=[(padding, padding)],
        rhs_dilation=(dilation,), dimension_numbers=("NCH", "OIH", "NCH"))
    return out + b[None, :, None]


def _bn_eval_ref(x, g, be, m, v, eps):
    return (x - m[None, :, None]) * (g / jnp.sqrt(v + eps))[None, :, None] + be[None, :, None]


def temporal_block_reference(x, params, *, stride, dilation, padding, eps=1e-5):
    PL = padding - dilation
    out = _conv1d_ref(x, params["w1"], params["b1"], stride=stride,
                      padding=padding, dilation=dilation)
    out = jnp.pad(out, ((0, 0), (0, 0), (PL, 0)))
    out = jax.nn.relu(_bn_eval_ref(out, params["g1"], params["be1"],
                                   params["rm1"], params["rv1"], eps))
    out = _conv1d_ref(out, params["w2"], params["b2"], stride=stride,
                      padding=padding, dilation=dilation)
    out = jnp.pad(out, ((0, 0), (0, 0), (PL, 0)))
    out = jax.nn.relu(_bn_eval_ref(out, params["g2"], params["be2"],
                                   params["rm2"], params["rv2"], eps))
    if params.get("wd") is not None:
        res = _conv1d_ref(x, params["wd"], params["bd"], stride=1, padding=0, dilation=1)
    else:
        res = x
    Lo, Lr = out.shape[2], res.shape[2]
    if Lo != Lr:
        res = res[:, :, :Lo] if Lr > Lo else jnp.pad(res, ((0, 0), (0, 0), (0, Lo - Lr)))
    return jax.nn.relu(out + res)


# ----------------------------------------------------------------------------
# Deterministic parameter construction + demo run
# ----------------------------------------------------------------------------
def make_params(key, n_inputs, n_outputs, kernel_size):
    ks = jax.random.split(key, 8)
    p = {
        "w1": 0.1 * jax.random.normal(ks[0], (n_outputs, n_inputs, kernel_size), jnp.float32),
        "b1": 0.1 * jax.random.normal(ks[1], (n_outputs,), jnp.float32),
        "w2": 0.1 * jax.random.normal(ks[2], (n_outputs, n_outputs, kernel_size), jnp.float32),
        "b2": 0.1 * jax.random.normal(ks[3], (n_outputs,), jnp.float32),
        "g1": 1.0 + 0.05 * jax.random.normal(ks[4], (n_outputs,), jnp.float32),
        "be1": 0.05 * jax.random.normal(ks[5], (n_outputs,), jnp.float32),
        "rm1": 0.02 * jnp.arange(n_outputs, dtype=jnp.float32),
        "rv1": 1.0 + 0.01 * jnp.arange(n_outputs, dtype=jnp.float32),
        "g2": 1.0 + 0.05 * jax.random.normal(ks[6], (n_outputs,), jnp.float32),
        "be2": 0.05 * jax.random.normal(ks[7], (n_outputs,), jnp.float32),
        "rm2": -0.02 * jnp.arange(n_outputs, dtype=jnp.float32),
        "rv2": 1.0 + 0.02 * jnp.arange(n_outputs, dtype=jnp.float32),
    }
    if n_inputs != n_outputs:
        kd = jax.random.split(ks[0], 2)
        p["wd"] = 0.1 * jax.random.normal(kd[0], (n_outputs, n_inputs, 1), jnp.float32)
        p["bd"] = 0.1 * jax.random.normal(kd[1], (n_outputs,), jnp.float32)
    else:
        p["wd"] = None
        p["bd"] = None
    return p


if __name__ == "__main__":
    key = jax.random.PRNGKey(0)

    configs = [
        # (N, Cin, Cout, L, K, stride, dilation, padding)
        (2, 4, 8, 16, 3, 1, 1, 2),    # downsample residual (Cin != Cout), dilation 1
        (2, 8, 8, 16, 3, 1, 2, 4),    # identity residual (Cin == Cout), dilation 2
    ]
    for cfg_i, (N, ci, co, L, K, st, dil, pad) in enumerate(configs):
        kx, kp, key = jax.random.split(key, 3)
        x = jax.random.normal(kx, (N, ci, L), jnp.float32)
        params = make_params(kp, ci, co, K)

        fwd = jax.jit(functools.partial(temporal_block_forward, kernel_size=K,
                                        stride=st, dilation=dil, padding=pad))
        out = jax.block_until_ready(fwd(x, params))

        # Shape sanity (chained conv + chomp lengths)
        l1 = L + 2 * pad - dil * (K - 1) + (pad - dil)
        l2 = l1 + 2 * pad - dil * (K - 1) + (pad - dil)
        assert out.shape == (N, co, l2), (cfg_i, out.shape)
        assert bool(jnp.all(out >= 0.0))

        # Numerical check against the pure-JAX PyTorch-semantics reference
        ref = temporal_block_reference(x, params, stride=st, dilation=dil, padding=pad)
        assert ref.shape == out.shape, (cfg_i, ref.shape, out.shape)
        assert bool(jnp.allclose(out, ref, atol=1e-3, rtol=1e-3)), \
            (cfg_i, float(jnp.max(jnp.abs(out - ref))))

    print("KERNEL_OK")
</pallas_src>

<mosaic_0001>
module attributes {stable_mosaic.version = 11 : i64} {
  func.func @_temporal_block_kernel(%arg0: i32, %arg1: memref<1x4x16xf32, #tpu.memory_space<vmem>>, %arg2: memref<3x8x4xf32, #tpu.memory_space<vmem>>, %arg3: memref<8x1xf32, #tpu.memory_space<vmem>>, %arg4: memref<8x1xf32, #tpu.memory_space<vmem>>, %arg5: memref<3x8x8xf32, #tpu.memory_space<vmem>>, %arg6: memref<8x1xf32, #tpu.memory_space<vmem>>, %arg7: memref<8x1xf32, #tpu.memory_space<vmem>>, %arg8: memref<1x8x4xf32, #tpu.memory_space<vmem>>, %arg9: memref<8x1xf32, #tpu.memory_space<vmem>>, %arg10: memref<1x8x22xf32, #tpu.memory_space<vmem>>) attributes {dimension_semantics = [#tpu.dimension_semantics<parallel>], iteration_bounds = array<i64: 2>, scalar_prefetch = 0 : i64, scratch_operands = 0 : i64, tpu.core_type = #tpu.core_type<tc>, window_params = [{transform_indices = @transform_0, window_bounds = array<i64: 1, 4, 16>}, {pipeline_mode = #tpu.pipeline_mode<synchronous>, transform_indices = @transform_1, window_bounds = array<i64: 3, 8, 4>}, {pipeline_mode = #tpu.pipeline_mode<synchronous>, transform_indices = @transform_2, window_bounds = array<i64: 8, 1>}, {pipeline_mode = #tpu.pipeline_mode<synchronous>, transform_indices = @transform_3, window_bounds = array<i64: 8, 1>}, {pipeline_mode = #tpu.pipeline_mode<synchronous>, transform_indices = @transform_4, window_bounds = array<i64: 3, 8, 8>}, {pipeline_mode = #tpu.pipeline_mode<synchronous>, transform_indices = @transform_5, window_bounds = array<i64: 8, 1>}, {pipeline_mode = #tpu.pipeline_mode<synchronous>, transform_indices = @transform_6, window_bounds = array<i64: 8, 1>}, {pipeline_mode = #tpu.pipeline_mode<synchronous>, transform_indices = @transform_7, window_bounds = array<i64: 1, 8, 4>}, {pipeline_mode = #tpu.pipeline_mode<synchronous>, transform_indices = @transform_8, window_bounds = array<i64: 8, 1>}, {transform_indices = @transform_9, window_bounds = array<i64: 1, 8, 22>}]} {
    %c0 = arith.constant 0 : index
    %c0_0 = arith.constant 0 : index
    %c0_1 = arith.constant 0 : index
    %0 = vector.load %arg1[%c0, %c0_0, %c0_1] : memref<1x4x16xf32, #tpu.memory_space<vmem>>, vector<1x4x16xf32>
    %1 = vector.shape_cast %0 : vector<1x4x16xf32> to vector<4x16xf32>
    %cst = arith.constant 0.000000e+00 : f32
    %2 = vector.broadcast %cst : f32 to vector<4x2xf32>
    %3 = tpu.concatenate %2, %1, %2 in 1 : vector<4x2xf32>, vector<4x16xf32>, vector<4x2xf32> -> vector<4x20xf32>
    %cst_2 = arith.constant 0.000000e+00 : f32
    %4 = vector.broadcast %cst_2 : f32 to vector<8x18xf32>
    %c0_3 = arith.constant 0 : index
    %c0_4 = arith.constant 0 : index
    %c0_5 = arith.constant 0 : index
    %5 = vector.load %arg2[%c0_3, %c0_4, %c0_5] : memref<3x8x4xf32, #tpu.memory_space<vmem>>, vector<1x8x4xf32>
    %6 = vector.shape_cast %5 : vector<1x8x4xf32> to vector<8x4xf32>
    %7 = vector.extract_strided_slice %3 {offsets = [0, 0], sizes = [4, 18], strides = [1, 1]} : vector<4x20xf32> to vector<4x18xf32>
    %cst_6 = arith.constant dense<0.000000e+00> : vector<8x18xf32>
    %8 = tpu.matmul %6, %7, %cst_6 {dimension_numbers = #tpu.dot_dimension_numbers<[1], [0], [0], [1], [0, 0, 1, 1], [], []>} : vector<8x4xf32>, vector<4x18xf32>, vector<8x18xf32> -> vector<8x18xf32>
    %9 = arith.addf %4, %8 : vector<8x18xf32>
    %c1 = arith.constant 1 : index
    %c0_7 = arith.constant 0 : index
    %c0_8 = arith.constant 0 : index
    %10 = vector.load %arg2[%c1, %c0_7, %c0_8] : memref<3x8x4xf32, #tpu.memory_space<vmem>>, vector<1x8x4xf32>
    %11 = vector.shape_cast %10 : vector<1x8x4xf32> to vector<8x4xf32>
    %12 = vector.extract_strided_slice %3 {offsets = [0, 1], sizes = [4, 18], strides = [1, 1]} : vector<4x20xf32> to vector<4x18xf32>
    %cst_9 = arith.constant dense<0.000000e+00> : vector<8x18xf32>
    %13 = tpu.matmul %11, %12, %cst_9 {dimension_numbers = #tpu.dot_dimension_numbers<[1], [0], [0], [1], [0, 0, 1, 1], [], []>} : vector<8x4xf32>, vector<4x18xf32>, vector<8x18xf32> -> vector<8x18xf32>
    %14 = arith.addf %9, %13 : vector<8x18xf32>
    %c2 = arith.constant 2 : index
    %c0_10 = arith.constant 0 : index
    %c0_11 = arith.constant 0 : index
    %15 = vector.load %arg2[%c2, %c0_10, %c0_11] : memref<3x8x4xf32, #tpu.memory_space<vmem>>, vector<1x8x4xf32>
    %16 = vector.shape_cast %15 : vector<1x8x4xf32> to vector<8x4xf32>
    %17 = vector.extract_strided_slice %3 {offsets = [0, 2], sizes = [4, 18], strides = [1, 1]} : vector<4x20xf32> to vector<4x18xf32>
    %cst_12 = arith.constant dense<0.000000e+00> : vector<8x18xf32>
    %18 = tpu.matmul %16, %17, %cst_12 {dimension_numbers = #tpu.dot_dimension_numbers<[1], [0], [0], [1], [0, 0, 1, 1], [], []>} : vector<8x4xf32>, vector<4x18xf32>, vector<8x18xf32> -> vector<8x18xf32>
    %19 = arith.addf %14, %18 : vector<8x18xf32>
    %c0_13 = arith.constant 0 : index
    %c0_14 = arith.constant 0 : index
    %20 = vector.load %arg3[%c0_13, %c0_14] : memref<8x1xf32, #tpu.memory_space<vmem>>, vector<8x1xf32>
    %21 = vector.broadcast %20 : vector<8x1xf32> to vector<8x18xf32>
    %22 = arith.addf %19, %21 : vector<8x18xf32>
    %cst_15 = arith.constant 0.000000e+00 : f32
    %23 = vector.broadcast %cst_15 : f32 to vector<8x18xf32>
    %24 = arith.maximumf %22, %23 : vector<8x18xf32>
    %c0_16 = arith.constant 0 : index
    %c0_17 = arith.constant 0 : index
    %25 = vector.load %arg4[%c0_16, %c0_17] : memref<8x1xf32, #tpu.memory_space<vmem>>, vector<8x1xf32>
    %26 = tpu.concatenate %25, %24 in 1 : vector<8x1xf32>, vector<8x18xf32> -> vector<8x19xf32>
    %cst_18 = arith.constant 0.000000e+00 : f32
    %27 = vector.broadcast %cst_18 : f32 to vector<8x2xf32>
    %28 = tpu.concatenate %27, %26, %27 in 1 : vector<8x2xf32>, vector<8x19xf32>, vector<8x2xf32> -> vector<8x23xf32>
    %cst_19 = arith.constant 0.000000e+00 : f32
    %29 = vector.broadcast %cst_19 : f32 to vector<8x21xf32>
    %c0_20 = arith.constant 0 : index
    %c0_21 = arith.constant 0 : index
    %c0_22 = arith.constant 0 : index
    %30 = vector.load %arg5[%c0_20, %c0_21, %c0_22] : memref<3x8x8xf32, #tpu.memory_space<vmem>>, vector<1x8x8xf32>
    %31 = vector.shape_cast %30 : vector<1x8x8xf32> to vector<8x8xf32>
    %32 = vector.extract_strided_slice %28 {offsets = [0, 0], sizes = [8, 21], strides = [1, 1]} : vector<8x23xf32> to vector<8x21xf32>
    %cst_23 = arith.constant dense<0.000000e+00> : vector<8x21xf32>
    %33 = tpu.matmul %31, %32, %cst_23 {dimension_numbers = #tpu.dot_dimension_numbers<[1], [0], [0], [1], [0, 0, 1, 1], [], []>} : vector<8x8xf32>, vector<8x21xf32>, vector<8x21xf32> -> vector<8x21xf32>
    %34 = arith.addf %29, %33 : vector<8x21xf32>
    %c1_24 = arith.constant 1 : index
    %c0_25 = arith.constant 0 : index
    %c0_26 = arith.constant 0 : index
    %35 = vector.load %arg5[%c1_24, %c0_25, %c0_26] : memref<3x8x8xf32, #tpu.memory_space<vmem>>, vector<1x8x8xf32>
    %36 = vector.shape_cast %35 : vector<1x8x8xf32> to vector<8x8xf32>
    %37 = vector.extract_strided_slice %28 {offsets = [0, 1], sizes = [8, 21], strides = [1, 1]} : vector<8x23xf32> to vector<8x21xf32>
    %cst_27 = arith.constant dense<0.000000e+00> : vector<8x21xf32>
    %38 = tpu.matmul %36, %37, %cst_27 {dimension_numbers = #tpu.dot_dimension_numbers<[1], [0], [0], [1], [0, 0, 1, 1], [], []>} : vector<8x8xf32>, vector<8x21xf32>, vector<8x21xf32> -> vector<8x21xf32>
    %39 = arith.addf %34, %38 : vector<8x21xf32>
    %c2_28 = arith.constant 2 : index
    %c0_29 = arith.constant 0 : index
    %c0_30 = arith.constant 0 : index
    %40 = vector.load %arg5[%c2_28, %c0_29, %c0_30] : memref<3x8x8xf32, #tpu.memory_space<vmem>>, vector<1x8x8xf32>
    %41 = vector.shape_cast %40 : vector<1x8x8xf32> to vector<8x8xf32>
    %42 = vector.extract_strided_slice %28 {offsets = [0, 2], sizes = [8, 21], strides = [1, 1]} : vector<8x23xf32> to vector<8x21xf32>
    %cst_31 = arith.constant dense<0.000000e+00> : vector<8x21xf32>
    %43 = tpu.matmul %41, %42, %cst_31 {dimension_numbers = #tpu.dot_dimension_numbers<[1], [0], [0], [1], [0, 0, 1, 1], [], []>} : vector<8x8xf32>, vector<8x21xf32>, vector<8x21xf32> -> vector<8x21xf32>
    %44 = arith.addf %39, %43 : vector<8x21xf32>
    %c0_32 = arith.constant 0 : index
    %c0_33 = arith.constant 0 : index
    %45 = vector.load %arg6[%c0_32, %c0_33] : memref<8x1xf32, #tpu.memory_space<vmem>>, vector<8x1xf32>
    %46 = vector.broadcast %45 : vector<8x1xf32> to vector<8x21xf32>
    %47 = arith.addf %44, %46 : vector<8x21xf32>
    %cst_34 = arith.constant 0.000000e+00 : f32
    %48 = vector.broadcast %cst_34 : f32 to vector<8x21xf32>
    %49 = arith.maximumf %47, %48 : vector<8x21xf32>
    %c0_35 = arith.constant 0 : index
    %c0_36 = arith.constant 0 : index
    %50 = vector.load %arg7[%c0_35, %c0_36] : memref<8x1xf32, #tpu.memory_space<vmem>>, vector<8x1xf32>
    %51 = tpu.concatenate %50, %49 in 1 : vector<8x1xf32>, vector<8x21xf32> -> vector<8x22xf32>
    %c0_37 = arith.constant 0 : index
    %c0_38 = arith.constant 0 : index
    %c0_39 = arith.constant 0 : index
    %52 = vector.load %arg8[%c0_37, %c0_38, %c0_39] : memref<1x8x4xf32, #tpu.memory_space<vmem>>, vector<1x8x4xf32>
    %53 = vector.shape_cast %52 : vector<1x8x4xf32> to vector<8x4xf32>
    %cst_40 = arith.constant dense<0.000000e+00> : vector<8x16xf32>
    %54 = tpu.matmul %53, %1, %cst_40 {dimension_numbers = #tpu.dot_dimension_numbers<[1], [0], [0], [1], [0, 0, 1, 1], [], []>} : vector<8x4xf32>, vector<4x16xf32>, vector<8x16xf32> -> vector<8x16xf32>
    %c0_41 = arith.constant 0 : index
    %c0_42 = arith.constant 0 : index
    %55 = vector.load %arg9[%c0_41, %c0_42] : memref<8x1xf32, #tpu.memory_space<vmem>>, vector<8x1xf32>
    %56 = vector.broadcast %55 : vector<8x1xf32> to vector<8x16xf32>
    %57 = arith.addf %54, %56 : vector<8x16xf32>
    %cst_43 = arith.constant 0.000000e+00 : f32
    %58 = vector.broadcast %cst_43 : f32 to vector<8x6xf32>
    %59 = tpu.concatenate %57, %58 in 1 : vector<8x16xf32>, vector<8x6xf32> -> vector<8x22xf32>
    %60 = arith.addf %51, %59 : vector<8x22xf32>
    %cst_44 = arith.constant 0.000000e+00 : f32
    %61 = vector.broadcast %cst_44 : f32 to vector<8x22xf32>
    %62 = arith.maximumf %60, %61 : vector<8x22xf32>
    %c0_45 = arith.constant 0 : index
    %c0_46 = arith.constant 0 : index
    %c0_47 = arith.constant 0 : index
    %63 = vector.load %arg10[%c0_45, %c0_46, %c0_47] : memref<1x8x22xf32, #tpu.memory_space<vmem>>, vector<1x8x22xf32>
    %64 = vector.shape_cast %63 : vector<1x8x22xf32> to vector<8x22xf32>
    %65 = vector.shape_cast %62 : vector<8x22xf32> to vector<1x8x22xf32>
    tpu.vector_store %arg10[%c0_45, %c0_46, %c0_47], %65 {strides = array<i32>} : memref<1x8x22xf32, #tpu.memory_space<vmem>>, vector<1x8x22xf32>,
    return
  }
  func.func @transform_0(%arg0: i32) -> (i32, i32, i32) {
    %c0_i32 = arith.constant 0 : i32
    %c0_i32_0 = arith.constant 0 : i32
    %c0_i32_1 = arith.constant 0 : i32
    return %arg0, %c0_i32, %c0_i32_0 : i32, i32, i32
  }
  func.func @transform_1(%arg0: i32) -> (i32, i32, i32) {
    %c0_i32 = arith.constant 0 : i32
    %c0_i32_0 = arith.constant 0 : i32
    %c0_i32_1 = arith.constant 0 : i32
    %c0_i32_2 = arith.constant 0 : i32
    return %c0_i32, %c0_i32_0, %c0_i32_1 : i32, i32, i32
  }
  func.func @transform_2(%arg0: i32) -> (i32, i32) {
    %c0_i32 = arith.constant 0 : i32
    %c0_i32_0 = arith.constant 0 : i32
    %c0_i32_1 = arith.constant 0 : i32
    return %c0_i32, %c0_i32_0 : i32, i32
  }
  func.func @transform_3(%arg0: i32) -> (i32, i32) {
    %c0_i32 = arith.constant 0 : i32
    %c0_i32_0 = arith.constant 0 : i32
    %c0_i32_1 = arith.constant 0 : i32
    return %c0_i32, %c0_i32_0 : i32, i32
  }
  func.func @transform_4(%arg0: i32) -> (i32, i32, i32) {
    %c0_i32 = arith.constant 0 : i32
    %c0_i32_0 = arith.constant 0 : i32
    %c0_i32_1 = arith.constant 0 : i32
    %c0_i32_2 = arith.constant 0 : i32
    return %c0_i32, %c0_i32_0, %c0_i32_1 : i32, i32, i32
  }
  func.func @transform_5(%arg0: i32) -> (i32, i32) {
    %c0_i32 = arith.constant 0 : i32
    %c0_i32_0 = arith.constant 0 : i32
    %c0_i32_1 = arith.constant 0 : i32
    return %c0_i32, %c0_i32_0 : i32, i32
  }
  func.func @transform_6(%arg0: i32) -> (i32, i32) {
    %c0_i32 = arith.constant 0 : i32
    %c0_i32_0 = arith.constant 0 : i32
    %c0_i32_1 = arith.constant 0 : i32
    return %c0_i32, %c0_i32_0 : i32, i32
  }
  func.func @transform_7(%arg0: i32) -> (i32, i32, i32) {
    %c0_i32 = arith.constant 0 : i32
    %c0_i32_0 = arith.constant 0 : i32
    %c0_i32_1 = arith.constant 0 : i32
    %c0_i32_2 = arith.constant 0 : i32
    return %c0_i32, %c0_i32_0, %c0_i32_1 : i32, i32, i32
  }
  func.func @transform_8(%arg0: i32) -> (i32, i32) {
    %c0_i32 = arith.constant 0 : i32
    %c0_i32_0 = arith.constant 0 : i32
    %c0_i32_1 = arith.constant 0 : i32
    return %c0_i32, %c0_i32_0 : i32, i32
  }
  func.func @transform_9(%arg0: i32) -> (i32, i32, i32) {
    %c0_i32 = arith.constant 0 : i32
    %c0_i32_0 = arith.constant 0 : i32
    %c0_i32_1 = arith.constant 0 : i32
    return %arg0, %c0_i32, %c0_i32_0 : i32, i32, i32
  }
}

</mosaic_0001>

<llo_original>
// kernel: temporal_block_forward.1
$region0: #{temporal_block_forward.1}
  #allocation0 [shape = 'u32[]', space=smem, size = 0x4, offset = 0x4, fixed_abs, tag = 'smem constant byte address 0x4 - core index']
  #allocation1 [shape = 'u32[144,128]{1,0:T(1,128)}', space=vmem, size = 0x12000, scoped, tag = 'internal scratch']
  %s0 = inlined_call_operand.vmem [shape: f32[2,4,16], index: 0, kind: input, shape index: {}]
  %s1 = inlined_call_operand.vmem [shape: f32[3,8,4], index: 1, kind: input, shape index: {}]
  %s2 = inlined_call_operand.vmem [shape: f32[8,1], index: 2, kind: input, shape index: {}]
  %s3 = inlined_call_operand.vmem [shape: f32[8,1], index: 3, kind: input, shape index: {}]
  %s4 = inlined_call_operand.vmem [shape: f32[3,8,8], index: 4, kind: input, shape index: {}]
  %s5 = inlined_call_operand.vmem [shape: f32[8,1], index: 5, kind: input, shape index: {}]
  %s6 = inlined_call_operand.vmem [shape: f32[8,1], index: 6, kind: input, shape index: {}]
  %s7 = inlined_call_operand.vmem [shape: f32[1,8,4], index: 7, kind: input, shape index: {}]
  %s8 = inlined_call_operand.vmem [shape: f32[8,1], index: 8, kind: input, shape index: {}]
  %s9 = inlined_call_operand.hbm [shape: f32[2,8,22], index: 9, kind: output, shape index: {}]
  %s10 = sld [smem:[#allocation0]]
  $region69: #{temporal_block_forward.1} parent=0
    _
  %s12 = ssub.s32 1, %s10
  %s13 = scalar_select 0, %s12, %s10
  $region1: #{temporal_block_forward.1} parent=0
    #allocation2 [shape = 'u8[8192]{0}', space=vmem, size = 0x2000, scoped, tag = 'output window, operand 0']
    #allocation3 [shape = 's32[2]{0}', space=sflag, size = 0x8, scoped, tag = 'scoped memory for temporal_block_forward.1']
    %14 = vsyncpa [#allocation3], 0
    %s15 = scalar_lea.sflag [#allocation3], 1
    %16 = vsyncpa %s15, 0
    loop: start=0, step=1, limit=4
    $region2: #{temporal_block_forward.1} parent=1 // loop_pre_header
      _
    $region3: #{temporal_block_forward.1} parent=1 // loop_header
      %s18 = sphi 0, %s22
      %p19 = scmp.ge.s32.totalorder %s18, 4
      %s28 = sphi 0, %s30
      %s31 = sphi 0, %s28
      %s32 = sphi 0, %s31
      %s48 = sphi 0, %s32
      %s52 = sphi 0, %s52
      %s54 = sphi 0, %s52
      %s55 = sphi 0, %s54
      %s69 = sphi 0, %s55
      %s73 = sphi 0, %s73
      %s75 = sphi 0, %s73
      %s76 = sphi 0, %s75
      %s90 = sphi 0, %s76
      %s94 = sphi 0, %s94
      %s96 = sphi 0, %s94
      %s97 = sphi 0, %s96
      %s111 = sphi 0, %s97
      %s115 = sphi 0, %s115
      %s117 = sphi 0, %s115
      %s118 = sphi 0, %s117
      %s132 = sphi 0, %s118
      %s136 = sphi 0, %s136
      %s138 = sphi 0, %s136
      %s139 = sphi 0, %s138
      %s153 = sphi 0, %s139
      %s157 = sphi 0, %s157
      %s159 = sphi 0, %s157
      %s160 = sphi 0, %s159
      %s174 = sphi 0, %s160
      %s178 = sphi 0, %s178
      %s180 = sphi 0, %s178
      %s181 = sphi 0, %s180
      %s195 = sphi 0, %s181
      %s199 = sphi 0, %s199
      %s201 = sphi 0, %s199
      %s202 = sphi 0, %s201
      %s216 = sphi 0, %s202
      %s222 = sphi 0, %s224
      %s225 = sphi 0, %s222
      %s226 = sphi 0, %s225
      %s242 = sphi 0, %s226
    $region4: #{temporal_block_forward.1} parent=1 // loop_header_branch
      %21 = sbr.rel (%p19) target = $region8
    $region5: #{temporal_block_forward.1} parent=1 // loop_body
      %s23 = ssub.s32 %s18, 1
      %s24 = ssub.s32 %s18, 2
      %s25 = sadd.s32 %s18, 1
      %s26 = ssub.s32 %s18, %s25
      %p27 = scmp.eq.s32.totalorder %s26, 0
      %s29 = sadd.s32 %s28, 1
      %s30 = scalar_select %p27, %s28, %s29
      %p33 = pneg %p27
      %p34 = scmp.eq.s32.totalorder %s18, 1
      %p35 = por %p33, %p34
      %p36 = scmp.ne.s32.totalorder %s28, %s31
      %p37 = scmp.eq.s32.totalorder %s18, 0
      %p38 = por %p36, %p37
      %p39 = scmp.ne.s32.totalorder %s28, %s31
      %p40 = scmp.eq.s32.totalorder %s23, 1
      %p41 = por %p39, %p40
      %p42 = scmp.ne.s32.totalorder %s31, %s32
      %p43 = scmp.eq.s32.totalorder %s23, 0
      %p44 = por %p42, %p43
      %p45 = scmp.ne.s32.totalorder %s31, %s32
      %p46 = scmp.eq.s32.totalorder %s24, 1
      %p47 = por %p45, %p46
      %p49 = scmp.ne.s32.totalorder %s32, %s48
      %p50 = scmp.eq.s32.totalorder %s24, 0
      %p51 = por %p49, %p50
      %s53 = sadd.s32 %s52, 1
      %p56 = scmp.eq.s32.totalorder %s18, 1
      %p57 = scmp.ne.s32.totalorder %s52, %s54
      %p58 = scmp.eq.s32.totalorder %s18, 0
      %p59 = por %p57, %p58
      %p60 = scmp.ne.s32.totalorder %s52, %s54
      %p61 = scmp.eq.s32.totalorder %s23, 1
      %p62 = por %p60, %p61
      %p63 = scmp.ne.s32.totalorder %s54, %s55
      %p64 = scmp.eq.s32.totalorder %s23, 0
      %p65 = por %p63, %p64
      %p66 = scmp.ne.s32.totalorder %s54, %s55
      %p67 = scmp.eq.s32.totalorder %s24, 1
      %p68 = por %p66, %p67
      %p70 = scmp.ne.s32.totalorder %s55, %s69
      %p71 = scmp.eq.s32.totalorder %s24, 0
      %p72 = por %p70, %p71
      %s74 = sadd.s32 %s73, 1
      %p77 = scmp.eq.s32.totalorder %s18, 1
      %p78 = scmp.ne.s32.totalorder %s73, %s75
      %p79 = scmp.eq.s32.totalorder %s18, 0
      %p80 = por %p78, %p79
      %p81 = scmp.ne.s32.totalorder %s73, %s75
      %p82 = scmp.eq.s32.totalorder %s23, 1
      %p83 = por %p81, %p82
      %p84 = scmp.ne.s32.totalorder %s75, %s76
      %p85 = scmp.eq.s32.totalorder %s23, 0
      %p86 = por %p84, %p85
      %p87 = scmp.ne.s32.totalorder %s75, %s76
      %p88 = scmp.eq.s32.totalorder %s24, 1
      %p89 = por %p87, %p88
      %p91 = scmp.ne.s32.totalorder %s76, %s90
      %p92 = scmp.eq.s32.totalorder %s24, 0
      %p93 = por %p91, %p92
      %s95 = sadd.s32 %s94, 1
      %p98 = scmp.eq.s32.totalorder %s18, 1
      %p99 = scmp.ne.s32.totalorder %s94, %s96
      %p100 = scmp.eq.s32.totalorder %s18, 0
      %p101 = por %p99, %p100
      %p102 = scmp.ne.s32.totalorder %s94, %s96
      %p103 = scmp.eq.s32.totalorder %s23, 1
      %p104 = por %p102, %p103
      %p105 = scmp.ne.s32.totalorder %s96, %s97
      %p106 = scmp.eq.s32.totalorder %s23, 0
      %p107 = por %p105, %p106
      %p108 = scmp.ne.s32.totalorder %s96, %s97
      %p109 = scmp.eq.s32.totalorder %s24, 1
      %p110 = por %p108, %p109
      %p112 = scmp.ne.s32.totalorder %s97, %s111
      %p113 = scmp.eq.s32.totalorder %s24, 0
      %p114 = por %p112, %p113
      %s116 = sadd.s32 %s115, 1
      %p119 = scmp.eq.s32.totalorder %s18, 1
      %p120 = scmp.ne.s32.totalorder %s115, %s117
      %p121 = scmp.eq.s32.totalorder %s18, 0
      %p122 = por %p120, %p121
      %p123 = scmp.ne.s32.totalorder %s115, %s117
      %p124 = scmp.eq.s32.totalorder %s23, 1
      %p125 = por %p123, %p124
      %p126 = scmp.ne.s32.totalorder %s117, %s118
      %p127 = scmp.eq.s32.totalorder %s23, 0
      %p128 = por %p126, %p127
      %p129 = scmp.ne.s32.totalorder %s117, %s118
      %p130 = scmp.eq.s32.totalorder %s24, 1
      %p131 = por %p129, %p130
      %p133 = scmp.ne.s32.totalorder %s118, %s132
      %p134 = scmp.eq.s32.totalorder %s24, 0
      %p135 = por %p133, %p134
      %s137 = sadd.s32 %s136, 1
      %p140 = scmp.eq.s32.totalorder %s18, 1
      %p141 = scmp.ne.s32.totalorder %s136, %s138
      %p142 = scmp.eq.s32.totalorder %s18, 0
      %p143 = por %p141, %p142
      %p144 = scmp.ne.s32.totalorder %s136, %s138
      %p145 = scmp.eq.s32.totalorder %s23, 1
      %p146 = por %p144, %p145
      %p147 = scmp.ne.s32.totalorder %s138, %s139
      %p148 = scmp.eq.s32.totalorder %s23, 0
      %p149 = por %p147, %p148
      %p150 = scmp.ne.s32.totalorder %s138, %s139
      %p151 = scmp.eq.s32.totalorder %s24, 1
      %p152 = por %p150, %p151
      %p154 = scmp.ne.s32.totalorder %s139, %s153
      %p155 = scmp.eq.s32.totalorder %s24, 0
      %p156 = por %p154, %p155
      %s158 = sadd.s32 %s157, 1
      %p161 = scmp.eq.s32.totalorder %s18, 1
      %p162 = scmp.ne.s32.totalorder %s157, %s159
      %p163 = scmp.eq.s32.totalorder %s18, 0
      %p164 = por %p162, %p163
      %p165 = scmp.ne.s32.totalorder %s157, %s159
      %p166 = scmp.eq.s32.totalorder %s23, 1
      %p167 = por %p165, %p166
      %p168 = scmp.ne.s32.totalorder %s159, %s160
      %p169 = scmp.eq.s32.totalorder %s23, 0
      %p170 = por %p168, %p169
      %p171 = scmp.ne.s32.totalorder %s159, %s160
      %p172 = scmp.eq.s32.totalorder %s24, 1
      %p173 = por %p171, %p172
      %p175 = scmp.ne.s32.totalorder %s160, %s174
      %p176 = scmp.eq.s32.totalorder %s24, 0
      %p177 = por %p175, %p176
      %s179 = sadd.s32 %s178, 1
      %p182 = scmp.eq.s32.totalorder %s18, 1
      %p183 = scmp.ne.s32.totalorder %s178, %s180
      %p184 = scmp.eq.s32.totalorder %s18, 0
      %p185 = por %p183, %p184
      %p186 = scmp.ne.s32.totalorder %s178, %s180
      %p187 = scmp.eq.s32.totalorder %s23, 1
      %p188 = por %p186, %p187
      %p189 = scmp.ne.s32.totalorder %s180, %s181
      %p190 = scmp.eq.s32.totalorder %s23, 0
      %p191 = por %p189, %p190
      %p192 = scmp.ne.s32.totalorder %s180, %s181
      %p193 = scmp.eq.s32.totalorder %s24, 1
      %p194 = por %p192, %p193
      %p196 = scmp.ne.s32.totalorder %s181, %s195
      %p197 = scmp.eq.s32.totalorder %s24, 0
      %p198 = por %p196, %p197
      %s200 = sadd.s32 %s199, 1
      %p203 = scmp.eq.s32.totalorder %s18, 1
      %p204 = scmp.ne.s32.totalorder %s199, %s201
      %p205 = scmp.eq.s32.totalorder %s18, 0
      %p206 = por %p204, %p205
      %p207 = scmp.ne.s32.totalorder %s199, %s201
      %p208 = scmp.eq.s32.totalorder %s23, 1
      %p209 = por %p207, %p208
      %p210 = scmp.ne.s32.totalorder %s201, %s202
      %p211 = scmp.eq.s32.totalorder %s23, 0
      %p212 = por %p210, %p211
      %p213 = scmp.ne.s32.totalorder %s201, %s202
      %p214 = scmp.eq.s32.totalorder %s24, 1
      %p215 = por %p213, %p214
      %p217 = scmp.ne.s32.totalorder %s202, %s216
      %p218 = scmp.eq.s32.totalorder %s24, 0
      %p219 = por %p217, %p218
      %s220 = ssub.s32 %s18, %s25
      %p221 = scmp.eq.s32.totalorder %s220, 0
      %s223 = sadd.s32 %s222, 1
      %s224 = scalar_select %p221, %s222, %s223
      %p227 = pneg %p221
      %p228 = scmp.eq.s32.totalorder %s18, 1
      %p229 = por %p227, %p228
      %p230 = scmp.ne.s32.totalorder %s222, %s225
      %p231 = scmp.eq.s32.totalorder %s18, 0
      %p232 = por %p230, %p231
      %p233 = scmp.ne.s32.totalorder %s222, %s225
      %p234 = scmp.eq.s32.totalorder %s23, 1
      %p235 = por %p233, %p234
      %p236 = scmp.ne.s32.totalorder %s225, %s226
      %p237 = scmp.eq.s32.totalorder %s23, 0
      %p238 = por %p236, %p237
      %p239 = scmp.ne.s32.totalorder %s225, %s226
      %p240 = scmp.eq.s32.totalorder %s24, 1
      %p241 = por %p239, %p240
      %p243 = scmp.ne.s32.totalorder %s226, %s242
      %p244 = scmp.eq.s32.totalorder %s24, 0
      %p245 = por %p243, %p244
      %p246 = scmp.le.s32.totalorder 1, %s18
      %p247 = scmp.lt.s32.totalorder %s18, 3
      %p248 = pnand %p246, %p247
      %p249 = pneg %p248
      // Predicated region
      $region9: #{temporal_block_forward.1} parent=5 // pred_check
        _
      $region10: #{temporal_block_forward.1} parent=5 // pred_check_branch
        %251 = sbr.rel (%p248) target = $region12
      $region11: #{temporal_block_forward.1} parent=5 // pred_region
        %s252 = ssub.s32 %s18, 1
        // Predicated region
        $region13: #{temporal_block_forward.1} parent=11 // pred_check
          %p253 = pneg %p65
        $region14: #{temporal_block_forward.1} parent=11 // pred_check_branch
          %255 = sbr.rel (%p253) target = $region16
        $region15: #{temporal_block_forward.1} parent=11 // pred_region
          _
        $region16: #{temporal_block_forward.1} parent=11 // pred_fallthru
          _
        // Predicated region
        $region17: #{temporal_block_forward.1} parent=11 // pred_check
          %p256 = pneg %p86
        $region18: #{temporal_block_forward.1} parent=11 // pred_check_branch
          %258 = sbr.rel (%p256) target = $region20
        $region19: #{temporal_block_forward.1} parent=11 // pred_region
          _
        $region20: #{temporal_block_forward.1} parent=11 // pred_fallthru
          _
        // Predicated region
        $region21: #{temporal_block_forward.1} parent=11 // pred_check
          %p259 = pneg %p107
        $region22: #{temporal_block_forward.1} parent=11 // pred_check_branch
          %261 = sbr.rel (%p259) target = $region24
        $region23: #{temporal_block_forward.1} parent=11 // pred_region
          _
        $region24: #{temporal_block_forward.1} parent=11 // pred_fallthru
          _
        // Predicated region
        $region25: #{temporal_block_forward.1} parent=11 // pred_check
          %p262 = pneg %p128
        $region26: #{temporal_block_forward.1} parent=11 // pred_check_branch
          %264 = sbr.rel (%p262) target = $region28
        $region27: #{temporal_block_forward.1} parent=11 // pred_region
          _
        $region28: #{temporal_block_forward.1} parent=11 // pred_fallthru
          _
        // Predicated region
        $region29: #{temporal_block_forward.1} parent=11 // pred_check
          %p265 = pneg %p149
        $region30: #{temporal_block_forward.1} parent=11 // pred_check_branch
          %267 = sbr.rel (%p265) target = $region32
        $region31: #{temporal_block_forward.1} parent=11 // pred_region
          _
        $region32: #{temporal_block_forward.1} parent=11 // pred_fallthru
          _
        // Predicated region
        $region33: #{temporal_block_forward.1} parent=11 // pred_check
          %p268 = pneg %p170
        $region34: #{temporal_block_forward.1} parent=11 // pred_check_branch
          %270 = sbr.rel (%p268) target = $region36
        $region35: #{temporal_block_forward.1} parent=11 // pred_region
          _
        $region36: #{temporal_block_forward.1} parent=11 // pred_fallthru
          _
        // Predicated region
        $region37: #{temporal_block_forward.1} parent=11 // pred_check
          %p271 = pneg %p191
        $region38: #{temporal_block_forward.1} parent=11 // pred_check_branch
          %273 = sbr.rel (%p271) target = $region40
        $region39: #{temporal_block_forward.1} parent=11 // pred_region
          _
        $region40: #{temporal_block_forward.1} parent=11 // pred_fallthru
          _
        // Predicated region
        $region41: #{temporal_block_forward.1} parent=11 // pred_check
          %p274 = pneg %p212
        $region42: #{temporal_block_forward.1} parent=11 // pred_check_branch
          %276 = sbr.rel (%p274) target = $region44
        $region43: #{temporal_block_forward.1} parent=11 // pred_region
          _
        $region44: #{temporal_block_forward.1} parent=11 // pred_fallthru
          _
      $region12: #{temporal_block_forward.1} parent=5 // pred_fallthru
        _
      %p277 = scmp.lt.s32.totalorder %s18, 2
      // Predicated region
      $region45: #{temporal_block_forward.1} parent=5 // pred_check
        %p278 = pneg %p277
      $region46: #{temporal_block_forward.1} parent=5 // pred_check_branch
        %280 = sbr.rel (%p278) target = $region48
      $region47: #{temporal_block_forward.1} parent=5 // pred_region
        // Predicated region
        $region49: #{temporal_block_forward.1} parent=47 // pred_check
          %p281 = pneg %p38
        $region50: #{temporal_block_forward.1} parent=47 // pred_check_branch
          %283 = sbr.rel (%p281) target = $region52
        $region51: #{temporal_block_forward.1} parent=47 // pred_region
          %p284 = scmp.lt.s32.totalorder %s18, 1
          %s285 = scalar_select %p284, %s18, 1
          %s286 = smul.addr %s285, 4
          %s287 = scalar_lea.vmem %s0, %s286
        $region52: #{temporal_block_forward.1} parent=47 // pred_fallthru
          _
      $region48: #{temporal_block_forward.1} parent=5 // pred_fallthru
        _
      %p288 = scmp.le.s32.totalorder 1, %s18
      %p289 = scmp.lt.s32.totalorder %s18, 3
      %p290 = pnand %p288, %p289
      %p291 = pneg %p290
      // Predicated region
      $region53: #{temporal_block_forward.1} parent=5 // pred_check
        _
      $region54: #{temporal_block_forward.1} parent=5 // pred_check_branch
        %293 = sbr.rel (%p290) target = $region56
      $region55: #{temporal_block_forward.1} parent=5 // pred_region
        %s294 = ssub.s32 %s18, 1
        %p295 = scmp.lt.s32.totalorder %s23, 1
        %s296 = scalar_select %p295, %s23, 1
        %s297 = smul.addr %s296, 4
        %s298 = scalar_lea.vmem %s0, %s297
        %p299 = pneg %p44
        %p300 = pneg %p41
        %p301 = pneg %p65
        %p302 = pneg %p62
        %p303 = pneg %p86
        %p304 = pneg %p83
        %p305 = pneg %p107
        %p306 = pneg %p104
        %p307 = pneg %p128
        %p308 = pneg %p125
        %p309 = pneg %p149
        %p310 = pneg %p146
        %p311 = pneg %p170
        %p312 = pneg %p167
        %p313 = pneg %p191
        %p314 = pneg %p188
        %p315 = pneg %p212
        %p316 = pneg %p209
        %p317 = pneg %p238
        %p318 = pneg %p235
        %s319 = sand.u32 %s225, 1
        %s320 = scalar_lea.sflag [#allocation3], %s319
        %s321 = sand.u32 %s225, 1
        %s322 = smul.addr %s321, 8
        %s323 = scalar_lea.vmem [#allocation2], %s322
        %p324 = scmp.lt.s32.totalorder %s23, 1
        %s325 = scalar_select %p324, %s23, 1
        %s326 = smul.addr %s325, 4
        %s327 = scalar_lea.vmem %s0, %s326
        %v328 = vld [vmem:[%s327] sm:$0xf]
        %330 = vrot.lane.b32.xlu0 %v328, 2
        %v331 = vpop.permute.xlu0 %330
        %vm333 = vcmask 15360
        %v334 = vsel %vm333, 0.0, %v331
        %vm335 = vcmask 146432
        %v336 = vsel %vm335, %v334, 0.0
        %v337 = vld [vmem:[%s1] sm:$0xff]
        %s338 = scalar_lea.vmem %s1, 8
        %v339 = vld [vmem:[%s338] sm:$0xff]
        %341 = vrot.lane.b32.xlu0 %v336, 127
        %v342 = vpop.permute.xlu0 %341
        %vm343 = vcmask 31744
        %v345 = vsel %vm343, %v339, 0
        %vm347 = vcmask 1043456
        %v348 = vsel %vm347, %v342, 0
        %350 = vmatprep.subr.mxu0 0.0
        %351 = vmatpush1.msra.mxu0 %v348
        %352 = vmatprep.subr.mxu0 0.0
        %353 = vmatpush1.msra.mxu0 0.0
        %354 = vmatprep.subr.mxu0 0.0
        %355 = vmatpush1.msra.mxu0 0.0
        %356 = vmatprep.subr.mxu0 0.0
        %357 = vmatpush1.msra.mxu0 0.0
        %358 = vmatprep.subr.mxu0 0.0
        %359 = vmatpush1.msra.mxu0 0.0
        %360 = vmatprep.subr.mxu0 0.0
        %361 = vmatpush1.msra.mxu0 0.0
        %362 = vmatprep.subr.mxu0 0.0
        %363 = vmatpush1.msra.mxu0 0.0
        %364 = vmatprep.subr.mxu0 0.0
        %365 = vmatpush1.msra.mxu0 0.0
        %366 = vmatprep.subr.mxu0 0.0
        %367 = vmatpush1.msra.mxu0 0.0
        %368 = vmatprep.subr.mxu0 0.0
        %369 = vmatpush1.msra.mxu0 0.0
        %370 = vmatprep.subr.mxu0 0.0
        %371 = vmatpush1.msra.mxu0 0.0
        %372 = vmatprep.subr.mxu0 0.0
        %373 = vmatpush1.msra.mxu0 0.0
        %374 = vmatprep.subr.mxu0 0.0
        %375 = vmatpush1.msra.mxu0 0.0
        %376 = vmatprep.subr.mxu0 0.0
        %377 = vmatpush1.msra.mxu0 0.0
        %378 = vmatprep.subr.mxu0 0.0
        %379 = vmatpush1.msra.mxu0 0.0
        %380 = vmatprep.subr.mxu0 0.0
        %381 = vmatpush1.msra.mxu0 0.0
        %382 = vmatprep.subr.mxu0 0.0
        %383 = vmatpush1.msra.mxu0 0.0
        %384 = vmatprep.subr.mxu0 0.0
        %385 = vmatpush1.msra.mxu0 0.0
        %386 = vmatprep.subr.mxu0 0.0
        %387 = vmatpush1.msra.mxu0 0.0
        %388 = vmatprep.subr.mxu0 0.0
        %389 = vmatpush1.msra.mxu0 0.0
        %390 = vmatprep.subr.mxu0 0.0
        %391 = vmatpush1.msra.mxu0 0.0
        %392 = vmatprep.subr.mxu0 0.0
        %393 = vmatpush1.msra.mxu0 0.0
        %394 = vmatprep.subr.mxu0 0.0
        %395 = vmatpush1.msra.mxu0 0.0
        %396 = vmatprep.subr.mxu0 0.0
        %397 = vmatpush1.msra.mxu0 0.0
        %398 = vmatprep.subr.mxu0 0.0
        %399 = vmatpush1.msra.mxu0 0.0
        %400 = vmatprep.subr.mxu0 0.0
        %401 = vmatpush1.msra.mxu0 0.0
        %402 = vmatprep.subr.mxu0 0.0
        %403 = vmatpush1.msra.mxu0 0.0
        %404 = vmatprep.subr.mxu0 0.0
        %405 = vmatpush1.msra.mxu0 0.0
        %406 = vmatprep.subr.mxu0 0.0
        %407 = vmatpush1.msra.mxu0 0.0
        %408 = vmatprep.subr.mxu0 0.0
        %409 = vmatpush1.msra.mxu0 0.0
        %410 = vmatprep.subr.mxu0 0.0
        %411 = vmatpush1.msra.mxu0 0.0
        %412 = vmatprep.subr.mxu0 0.0
        %413 = vmatpush1.msra.mxu0 0.0
        %414 = vmatprep.mubr.f32.mxu0 0.0
        %415 = vmatmul.mubr.f32.gmra.mrb[0].mxu0 %v345
        %v416 = vpop.f32.mrb[0].mxu0
        %v417 = vadd.f32 0.0, %v416
        %v418 = vpop.f32.mrb[0].mxu0
        %419 = vdwg.mxu0
        %v421 = vsel %vm343, %v337, 0
        %v423 = vsel %vm347, %v336, 0
        %425 = vmatprep.subr.mxu0 0.0
        %426 = vmatpush1.msra.mxu0 %v423
        %427 = vmatprep.subr.mxu0 0.0
        %428 = vmatpush1.msra.mxu0 0.0
        %429 = vmatprep.subr.mxu0 0.0
        %430 = vmatpush1.msra.mxu0 0.0
        %431 = vmatprep.subr.mxu0 0.0
        %432 = vmatpush1.msra.mxu0 0.0
        %433 = vmatprep.subr.mxu0 0.0
        %434 = vmatpush1.msra.mxu0 0.0
        %435 = vmatprep.subr.mxu0 0.0
        %436 = vmatpush1.msra.mxu0 0.0
        %437 = vmatprep.subr.mxu0 0.0
        %438 = vmatpush1.msra.mxu0 0.0
        %439 = vmatprep.subr.mxu0 0.0
        %440 = vmatpush1.msra.mxu0 0.0
        %441 = vmatprep.subr.mxu0 0.0
        %442 = vmatpush1.msra.mxu0 0.0
        %443 = vmatprep.subr.mxu0 0.0
        %444 = vmatpush1.msra.mxu0 0.0
        %445 = vmatprep.subr.mxu0 0.0
        %446 = vmatpush1.msra.mxu0 0.0
        %447 = vmatprep.subr.mxu0 0.0
        %448 = vmatpush1.msra.mxu0 0.0
        %449 = vmatprep.subr.mxu0 0.0
        %450 = vmatpush1.msra.mxu0 0.0
        %451 = vmatprep.subr.mxu0 0.0
        %452 = vmatpush1.msra.mxu0 0.0
        %453 = vmatprep.subr.mxu0 0.0
        %454 = vmatpush1.msra.mxu0 0.0
        %455 = vmatprep.subr.mxu0 0.0
        %456 = vmatpush1.msra.mxu0 0.0
        %457 = vmatprep.subr.mxu0 0.0
        %458 = vmatpush1.msra.mxu0 0.0
        %459 = vmatprep.subr.mxu0 0.0
        %460 = vmatpush1.msra.mxu0 0.0
        %461 = vmatprep.subr.mxu0 0.0
        %462 = vmatpush1.msra.mxu0 0.0
        %463 = vmatprep.subr.mxu0 0.0
        %464 = vmatpush1.msra.mxu0 0.0
        %465 = vmatprep.subr.mxu0 0.0
        %466 = vmatpush1.msra.mxu0 0.0
        %467 = vmatprep.subr.mxu0 0.0
        %468 = vmatpush1.msra.mxu0 0.0
        %469 = vmatprep.subr.mxu0 0.0
        %470 = vmatpush1.msra.mxu0 0.0
        %471 = vmatprep.subr.mxu0 0.0
        %472 = vmatpush1.msra.mxu0 0.0
        %473 = vmatprep.subr.mxu0 0.0
        %474 = vmatpush1.msra.mxu0 0.0
        %475 = vmatprep.subr.mxu0 0.0
        %476 = vmatpush1.msra.mxu0 0.0
        %477 = vmatprep.subr.mxu0 0.0
        %478 = vmatpush1.msra.mxu0 0.0
        %479 = vmatprep.subr.mxu0 0.0
        %480 = vmatpush1.msra.mxu0 0.0
        %481 = vmatprep.subr.mxu0 0.0
        %482 = vmatpush1.msra.mxu0 0.0
        %483 = vmatprep.subr.mxu0 0.0
        %484 = vmatpush1.msra.mxu0 0.0
        %485 = vmatprep.subr.mxu0 0.0
        %486 = vmatpush1.msra.mxu0 0.0
        %487 = vmatprep.subr.mxu0 0.0
        %488 = vmatpush1.msra.mxu0 0.0
        %489 = vmatprep.mubr.f32.mxu0 0.0
        %490 = vmatmul.mubr.f32.gmra.mrb[0].mxu0 %v421
        %v491 = vpop.f32.mrb[0].mxu0
        %v492 = vadd.f32 %v417, %v491
        %v493 = vpop.f32.mrb[0].mxu0
        %494 = vdwg.mxu0
        %s495 = scalar_lea.vmem %s1, 16
        %v496 = vld [vmem:[%s495] sm:$0xff]
        %497 = vrot.lane.b32.xlu0 %v336, 126
        %v498 = vpop.permute.xlu0 %497
        %v500 = vsel %vm343, %v496, 0
        %v502 = vsel %vm347, %v498, 0
        %504 = vmatprep.subr.mxu0 0.0
        %505 = vmatpush1.msra.mxu0 %v502
        %506 = vmatprep.subr.mxu0 0.0
        %507 = vmatpush1.msra.mxu0 0.0
        %508 = vmatprep.subr.mxu0 0.0
        %509 = vmatpush1.msra.mxu0 0.0
        %510 = vmatprep.subr.mxu0 0.0
        %511 = vmatpush1.msra.mxu0 0.0
        %512 = vmatprep.subr.mxu0 0.0
        %513 = vmatpush1.msra.mxu0 0.0
        %514 = vmatprep.subr.mxu0 0.0
        %515 = vmatpush1.msra.mxu0 0.0
        %516 = vmatprep.subr.mxu0 0.0
        %517 = vmatpush1.msra.mxu0 0.0
        %518 = vmatprep.subr.mxu0 0.0
        %519 = vmatpush1.msra.mxu0 0.0
        %520 = vmatprep.subr.mxu0 0.0
        %521 = vmatpush1.msra.mxu0 0.0
        %522 = vmatprep.subr.mxu0 0.0
        %523 = vmatpush1.msra.mxu0 0.0
        %524 = vmatprep.subr.mxu0 0.0
        %525 = vmatpush1.msra.mxu0 0.0
        %526 = vmatprep.subr.mxu0 0.0
        %527 = vmatpush1.msra.mxu0 0.0
        %528 = vmatprep.subr.mxu0 0.0
        %529 = vmatpush1.msra.mxu0 0.0
        %530 = vmatprep.subr.mxu0 0.0
        %531 = vmatpush1.msra.mxu0 0.0
        %532 = vmatprep.subr.mxu0 0.0
        %533 = vmatpush1.msra.mxu0 0.0
        %534 = vmatprep.subr.mxu0 0.0
        %535 = vmatpush1.msra.mxu0 0.0
        %536 = vmatprep.subr.mxu0 0.0
        %537 = vmatpush1.msra.mxu0 0.0
        %538 = vmatprep.subr.mxu0 0.0
        %539 = vmatpush1.msra.mxu0 0.0
        %540 = vmatprep.subr.mxu0 0.0
        %541 = vmatpush1.msra.mxu0 0.0
        %542 = vmatprep.subr.mxu0 0.0
        %543 = vmatpush1.msra.mxu0 0.0
        %544 = vmatprep.subr.mxu0 0.0
        %545 = vmatpush1.msra.mxu0 0.0
        %546 = vmatprep.subr.mxu0 0.0
        %547 = vmatpush1.msra.mxu0 0.0
        %548 = vmatprep.subr.mxu0 0.0
        %549 = vmatpush1.msra.mxu0 0.0
        %550 = vmatprep.subr.mxu0 0.0
        %551 = vmatpush1.msra.mxu0 0.0
        %552 = vmatprep.subr.mxu0 0.0
        %553 = vmatpush1.msra.mxu0 0.0
        %554 = vmatprep.subr.mxu0 0.0
        %555 = vmatpush1.msra.mxu0 0.0
        %556 = vmatprep.subr.mxu0 0.0
        %557 = vmatpush1.msra.mxu0 0.0
        %558 = vmatprep.subr.mxu0 0.0
        %559 = vmatpush1.msra.mxu0 0.0
        %560 = vmatprep.subr.mxu0 0.0
        %561 = vmatpush1.msra.mxu0 0.0
        %562 = vmatprep.subr.mxu0 0.0
        %563 = vmatpush1.msra.mxu0 0.0
        %564 = vmatprep.subr.mxu0 0.0
        %565 = vmatpush1.msra.mxu0 0.0
        %566 = vmatprep.subr.mxu0 0.0
        %567 = vmatpush1.msra.mxu0 0.0
        %568 = vmatprep.mubr.f32.mxu0 0.0
        %569 = vmatmul.mubr.f32.gmra.mrb[0].mxu0 %v500
        %v570 = vpop.f32.mrb[0].mxu0
        %v571 = vadd.f32 0.0, %v570
        %v572 = vpop.f32.mrb[0].mxu0
        %573 = vdwg.mxu0
        %v574 = vadd.f32 %v492, %v571
        %v575 = vld [vmem:[%s2] sm:$0xff]
        %577 = vset.pattern.permute.xlu0 0
        %578 = vperm.xlu0 %577, %v575
        %v579 = vpop.permute.xlu0 %578
        %v581 = vadd.f32 %v574, %v579
        %v582 = vmax.f32 %v581, 0.0
        %v583 = vld [vmem:[%s3] sm:$0xff]
        %585 = vrot.lane.b32.xlu0 %v582, 1
        %v586 = vpop.permute.xlu0 %585
        %vm588 = vcmask 7168
        %v589 = vsel %vm588, %v583, %v586
        %591 = vrot.lane.b32.xlu0 %v589, 2
        %v592 = vpop.permute.xlu0 %591
        %v594 = vsel %vm333, 0.0, %v592
        %vm595 = vcmask 171008
        %v596 = vsel %vm595, %v594, 0.0
        %v597 = vld [vmem:[%s4] sm:$0xff]
        %s598 = scalar_lea.vmem %s4, 8
        %v599 = vld [vmem:[%s598] sm:$0xff]
        %601 = vrot.lane.b32.xlu0 %v596, 127
        %v602 = vpop.permute.xlu0 %601
        %vm604 = vcmask 64512
        %v606 = vsel %vm604, %v599, 0
        %608 = vmatprep.subr.mxu0 0.0
        %609 = vmatpush1.msra.mxu0 %v602
        %610 = vmatprep.subr.mxu0 0.0
        %611 = vmatpush1.msra.mxu0 0.0
        %612 = vmatprep.subr.mxu0 0.0
        %613 = vmatpush1.msra.mxu0 0.0
        %614 = vmatprep.subr.mxu0 0.0
        %615 = vmatpush1.msra.mxu0 0.0
        %616 = vmatprep.subr.mxu0 0.0
        %617 = vmatpush1.msra.mxu0 0.0
        %618 = vmatprep.subr.mxu0 0.0
        %619 = vmatpush1.msra.mxu0 0.0
        %620 = vmatprep.subr.mxu0 0.0
        %621 = vmatpush1.msra.mxu0 0.0
        %622 = vmatprep.subr.mxu0 0.0
        %623 = vmatpush1.msra.mxu0 0.0
        %624 = vmatprep.subr.mxu0 0.0
        %625 = vmatpush1.msra.mxu0 0.0
        %626 = vmatprep.subr.mxu0 0.0
        %627 = vmatpush1.msra.mxu0 0.0
        %628 = vmatprep.subr.mxu0 0.0
        %629 = vmatpush1.msra.mxu0 0.0
        %630 = vmatprep.subr.mxu0 0.0
        %631 = vmatpush1.msra.mxu0 0.0
        %632 = vmatprep.subr.mxu0 0.0
        %633 = vmatpush1.msra.mxu0 0.0
        %634 = vmatprep.subr.mxu0 0.0
        %635 = vmatpush1.msra.mxu0 0.0
        %636 = vmatprep.subr.mxu0 0.0
        %637 = vmatpush1.msra.mxu0 0.0
        %638 = vmatprep.subr.mxu0 0.0
        %639 = vmatpush1.msra.mxu0 0.0
        %640 = vmatprep.subr.mxu0 0.0
        %641 = vmatpush1.msra.mxu0 0.0
        %642 = vmatprep.subr.mxu0 0.0
        %643 = vmatpush1.msra.mxu0 0.0
        %644 = vmatprep.subr.mxu0 0.0
        %645 = vmatpush1.msra.mxu0 0.0
        %646 = vmatprep.subr.mxu0 0.0
        %647 = vmatpush1.msra.mxu0 0.0
        %648 = vmatprep.subr.mxu0 0.0
        %649 = vmatpush1.msra.mxu0 0.0
        %650 = vmatprep.subr.mxu0 0.0
        %651 = vmatpush1.msra.mxu0 0.0
        %652 = vmatprep.subr.mxu0 0.0
        %653 = vmatpush1.msra.mxu0 0.0
        %654 = vmatprep.subr.mxu0 0.0
        %655 = vmatpush1.msra.mxu0 0.0
        %656 = vmatprep.subr.mxu0 0.0
        %657 = vmatpush1.msra.mxu0 0.0
        %658 = vmatprep.subr.mxu0 0.0
        %659 = vmatpush1.msra.mxu0 0.0
        %660 = vmatprep.subr.mxu0 0.0
        %661 = vmatpush1.msra.mxu0 0.0
        %662 = vmatprep.subr.mxu0 0.0
        %663 = vmatpush1.msra.mxu0 0.0
        %664 = vmatprep.subr.mxu0 0.0
        %665 = vmatpush1.msra.mxu0 0.0
        %666 = vmatprep.subr.mxu0 0.0
        %667 = vmatpush1.msra.mxu0 0.0
        %668 = vmatprep.subr.mxu0 0.0
        %669 = vmatpush1.msra.mxu0 0.0
        %670 = vmatprep.subr.mxu0 0.0
        %671 = vmatpush1.msra.mxu0 0.0
        %672 = vmatprep.mubr.f32.mxu0 0.0
        %673 = vmatmul.mubr.f32.gmra.mrb[0].mxu0 %v606
        %v674 = vpop.f32.mrb[0].mxu0
        %v675 = vadd.f32 0.0, %v674
        %v676 = vpop.f32.mrb[0].mxu0
        %677 = vdwg.mxu0
        %v679 = vsel %vm604, %v597, 0
        %681 = vmatprep.subr.mxu0 0.0
        %682 = vmatpush1.msra.mxu0 %v596
        %683 = vmatprep.subr.mxu0 0.0
        %684 = vmatpush1.msra.mxu0 0.0
        %685 = vmatprep.subr.mxu0 0.0
        %686 = vmatpush1.msra.mxu0 0.0
        %687 = vmatprep.subr.mxu0 0.0
        %688 = vmatpush1.msra.mxu0 0.0
        %689 = vmatprep.subr.mxu0 0.0
        %690 = vmatpush1.msra.mxu0 0.0
        %691 = vmatprep.subr.mxu0 0.0
        %692 = vmatpush1.msra.mxu0 0.0
        %693 = vmatprep.subr.mxu0 0.0
        %694 = vmatpush1.msra.mxu0 0.0
        %695 = vmatprep.subr.mxu0 0.0
        %696 = vmatpush1.msra.mxu0 0.0
        %697 = vmatprep.subr.mxu0 0.0
        %698 = vmatpush1.msra.mxu0 0.0
        %699 = vmatprep.subr.mxu0 0.0
        %700 = vmatpush1.msra.mxu0 0.0
        %701 = vmatprep.subr.mxu0 0.0
        %702 = vmatpush1.msra.mxu0 0.0
        %703 = vmatprep.subr.mxu0 0.0
        %704 = vmatpush1.msra.mxu0 0.0
        %705 = vmatprep.subr.mxu0 0.0
        %706 = vmatpush1.msra.mxu0 0.0
        %707 = vmatprep.subr.mxu0 0.0
        %708 = vmatpush1.msra.mxu0 0.0
        %709 = vmatprep.subr.mxu0 0.0
        %710 = vmatpush1.msra.mxu0 0.0
        %711 = vmatprep.subr.mxu0 0.0
        %712 = vmatpush1.msra.mxu0 0.0
        %713 = vmatprep.subr.mxu0 0.0
        %714 = vmatpush1.msra.mxu0 0.0
        %715 = vmatprep.subr.mxu0 0.0
        %716 = vmatpush1.msra.mxu0 0.0
        %717 = vmatprep.subr.mxu0 0.0
        %718 = vmatpush1.msra.mxu0 0.0
        %719 = vmatprep.subr.mxu0 0.0
        %720 = vmatpush1.msra.mxu0 0.0
        %721 = vmatprep.subr.mxu0 0.0
        %722 = vmatpush1.msra.mxu0 0.0
        %723 = vmatprep.subr.mxu0 0.0
        %724 = vmatpush1.msra.mxu0 0.0
        %725 = vmatprep.subr.mxu0 0.0
        %726 = vmatpush1.msra.mxu0 0.0
        %727 = vmatprep.subr.mxu0 0.0
        %728 = vmatpush1.msra.mxu0 0.0
        %729 = vmatprep.subr.mxu0 0.0
        %730 = vmatpush1.msra.mxu0 0.0
        %731 = vmatprep.subr.mxu0 0.0
        %732 = vmatpush1.msra.mxu0 0.0
        %733 = vmatprep.subr.mxu0 0.0
        %734 = vmatpush1.msra.mxu0 0.0
        %735 = vmatprep.subr.mxu0 0.0
        %736 = vmatpush1.msra.mxu0 0.0
        %737 = vmatprep.subr.mxu0 0.0
        %738 = vmatpush1.msra.mxu0 0.0
        %739 = vmatprep.subr.mxu0 0.0
        %740 = vmatpush1.msra.mxu0 0.0
        %741 = vmatprep.subr.mxu0 0.0
        %742 = vmatpush1.msra.mxu0 0.0
        %743 = vmatprep.subr.mxu0 0.0
        %744 = vmatpush1.msra.mxu0 0.0
        %745 = vmatprep.mubr.f32.mxu0 0.0
        %746 = vmatmul.mubr.f32.gmra.mrb[0].mxu0 %v679
        %v747 = vpop.f32.mrb[0].mxu0
        %v748 = vadd.f32 %v675, %v747
        %v749 = vpop.f32.mrb[0].mxu0
        %750 = vdwg.mxu0
        %s751 = scalar_lea.vmem %s4, 16
        %v752 = vld [vmem:[%s751] sm:$0xff]
        %753 = vrot.lane.b32.xlu0 %v596, 126
        %v754 = vpop.permute.xlu0 %753
        %v757 = vsel %vm604, %v752, 0
        %759 = vmatprep.subr.mxu0 0.0
        %760 = vmatpush1.msra.mxu0 %v754
        %761 = vmatprep.subr.mxu0 0.0
        %762 = vmatpush1.msra.mxu0 0.0
        %763 = vmatprep.subr.mxu0 0.0
        %764 = vmatpush1.msra.mxu0 0.0
        %765 = vmatprep.subr.mxu0 0.0
        %766 = vmatpush1.msra.mxu0 0.0
        %767 = vmatprep.subr.mxu0 0.0
        %768 = vmatpush1.msra.mxu0 0.0
        %769 = vmatprep.subr.mxu0 0.0
        %770 = vmatpush1.msra.mxu0 0.0
        %771 = vmatprep.subr.mxu0 0.0
        %772 = vmatpush1.msra.mxu0 0.0
        %773 = vmatprep.subr.mxu0 0.0
        %774 = vmatpush1.msra.mxu0 0.0
        %775 = vmatprep.subr.mxu0 0.0
        %776 = vmatpush1.msra.mxu0 0.0
        %777 = vmatprep.subr.mxu0 0.0
        %778 = vmatpush1.msra.mxu0 0.0
        %779 = vmatprep.subr.mxu0 0.0
        %780 = vmatpush1.msra.mxu0 0.0
        %781 = vmatprep.subr.mxu0 0.0
        %782 = vmatpush1.msra.mxu0 0.0
        %783 = vmatprep.subr.mxu0 0.0
        %784 = vmatpush1.msra.mxu0 0.0
        %785 = vmatprep.subr.mxu0 0.0
        %786 = vmatpush1.msra.mxu0 0.0
        %787 = vmatprep.subr.mxu0 0.0
        %788 = vmatpush1.msra.mxu0 0.0
        %789 = vmatprep.subr.mxu0 0.0
        %790 = vmatpush1.msra.mxu0 0.0
        %791 = vmatprep.subr.mxu0 0.0
        %792 = vmatpush1.msra.mxu0 0.0
        %793 = vmatprep.subr.mxu0 0.0
        %794 = vmatpush1.msra.mxu0 0.0
        %795 = vmatprep.subr.mxu0 0.0
        %796 = vmatpush1.msra.mxu0 0.0
        %797 = vmatprep.subr.mxu0 0.0
        %798 = vmatpush1.msra.mxu0 0.0
        %799 = vmatprep.subr.mxu0 0.0
        %800 = vmatpush1.msra.mxu0 0.0
        %801 = vmatprep.subr.mxu0 0.0
        %802 = vmatpush1.msra.mxu0 0.0
        %803 = vmatprep.subr.mxu0 0.0
        %804 = vmatpush1.msra.mxu0 0.0
        %805 = vmatprep.subr.mxu0 0.0
        %806 = vmatpush1.msra.mxu0 0.0
        %807 = vmatprep.subr.mxu0 0.0
        %808 = vmatpush1.msra.mxu0 0.0
        %809 = vmatprep.subr.mxu0 0.0
        %810 = vmatpush1.msra.mxu0 0.0
        %811 = vmatprep.subr.mxu0 0.0
        %812 = vmatpush1.msra.mxu0 0.0
        %813 = vmatprep.subr.mxu0 0.0
        %814 = vmatpush1.msra.mxu0 0.0
        %815 = vmatprep.subr.mxu0 0.0
        %816 = vmatpush1.msra.mxu0 0.0
        %817 = vmatprep.subr.mxu0 0.0
        %818 = vmatpush1.msra.mxu0 0.0
        %819 = vmatprep.subr.mxu0 0.0
        %820 = vmatpush1.msra.mxu0 0.0
        %821 = vmatprep.subr.mxu0 0.0
        %822 = vmatpush1.msra.mxu0 0.0
        %823 = vmatprep.mubr.f32.mxu0 0.0
        %824 = vmatmul.mubr.f32.gmra.mrb[0].mxu0 %v757
        %v825 = vpop.f32.mrb[0].mxu0
        %v826 = vadd.f32 0.0, %v825
        %v827 = vpop.f32.mrb[0].mxu0
        %828 = vdwg.mxu0
        %v829 = vadd.f32 %v748, %v826
        %v830 = vld [vmem:[%s5] sm:$0xff]
        %832 = vset.pattern.permute.xlu0 0
        %833 = vperm.xlu0 %832, %v830
        %v834 = vpop.permute.xlu0 %833
        %v836 = vadd.f32 %v829, %v834
        %v837 = vmax.f32 %v836, 0.0
        %v838 = vld [vmem:[%s6] sm:$0xff]
        %840 = vrot.lane.b32.xlu0 %v837, 1
        %v841 = vpop.permute.xlu0 %840
        %v843 = vsel %vm588, %v838, %v841
        %v844 = vld [vmem:[%s7] sm:$0xff]
        %v845 = vld [vmem:[%s8] sm:$0xff]
        %847 = vset.pattern.permute.xlu0 0
        %848 = vperm.xlu0 %847, %v845
        %v849 = vpop.permute.xlu0 %848
        %v852 = vsel %vm343, %v844, 0
        %v854 = vsel %vm347, %v328, 0
        %856 = vmatprep.subr.mxu0 0.0
        %857 = vmatpush1.msra.mxu0 %v854
        %858 = vmatprep.subr.mxu0 0.0
        %859 = vmatpush1.msra.mxu0 0.0
        %860 = vmatprep.subr.mxu0 0.0
        %861 = vmatpush1.msra.mxu0 0.0
        %862 = vmatprep.subr.mxu0 0.0
        %863 = vmatpush1.msra.mxu0 0.0
        %864 = vmatprep.subr.mxu0 0.0
        %865 = vmatpush1.msra.mxu0 0.0
        %866 = vmatprep.subr.mxu0 0.0
        %867 = vmatpush1.msra.mxu0 0.0
        %868 = vmatprep.subr.mxu0 0.0
        %869 = vmatpush1.msra.mxu0 0.0
        %870 = vmatprep.subr.mxu0 0.0
        %871 = vmatpush1.msra.mxu0 0.0
        %872 = vmatprep.subr.mxu0 0.0
        %873 = vmatpush1.msra.mxu0 0.0
        %874 = vmatprep.subr.mxu0 0.0
        %875 = vmatpush1.msra.mxu0 0.0
        %876 = vmatprep.subr.mxu0 0.0
        %877 = vmatpush1.msra.mxu0 0.0
        %878 = vmatprep.subr.mxu0 0.0
        %879 = vmatpush1.msra.mxu0 0.0
        %880 = vmatprep.subr.mxu0 0.0
        %881 = vmatpush1.msra.mxu0 0.0
        %882 = vmatprep.subr.mxu0 0.0
        %883 = vmatpush1.msra.mxu0 0.0
        %884 = vmatprep.subr.mxu0 0.0
        %885 = vmatpush1.msra.mxu0 0.0
        %886 = vmatprep.subr.mxu0 0.0
        %887 = vmatpush1.msra.mxu0 0.0
        %888 = vmatprep.subr.mxu0 0.0
        %889 = vmatpush1.msra.mxu0 0.0
        %890 = vmatprep.subr.mxu0 0.0
        %891 = vmatpush1.msra.mxu0 0.0
        %892 = vmatprep.subr.mxu0 0.0
        %893 = vmatpush1.msra.mxu0 0.0
        %894 = vmatprep.subr.mxu0 0.0
        %895 = vmatpush1.msra.mxu0 0.0
        %896 = vmatprep.subr.mxu0 0.0
        %897 = vmatpush1.msra.mxu0 0.0
        %898 = vmatprep.subr.mxu0 0.0
        %899 = vmatpush1.msra.mxu0 0.0
        %900 = vmatprep.subr.mxu0 0.0
        %901 = vmatpush1.msra.mxu0 0.0
        %902 = vmatprep.subr.mxu0 0.0
        %903 = vmatpush1.msra.mxu0 0.0
        %904 = vmatprep.subr.mxu0 0.0
        %905 = vmatpush1.msra.mxu0 0.0
        %906 = vmatprep.subr.mxu0 0.0
        %907 = vmatpush1.msra.mxu0 0.0
        %908 = vmatprep.subr.mxu0 0.0
        %909 = vmatpush1.msra.mxu0 0.0
        %910 = vmatprep.subr.mxu0 0.0
        %911 = vmatpush1.msra.mxu0 0.0
        %912 = vmatprep.subr.mxu0 0.0
        %913 = vmatpush1.msra.mxu0 0.0
        %914 = vmatprep.subr.mxu0 0.0
        %915 = vmatpush1.msra.mxu0 0.0
        %916 = vmatprep.subr.mxu0 0.0
        %917 = vmatpush1.msra.mxu0 0.0
        %918 = vmatprep.subr.mxu0 0.0
        %919 = vmatpush1.msra.mxu0 0.0
        %920 = vmatprep.mubr.f32.mxu0 0.0
        %921 = vmatmul.mubr.f32.gmra.mrb[0].mxu0 %v852
        %v922 = vpop.f32.mrb[0].mxu0
        %v923 = vadd.f32 %v849, %v922
        %v924 = vpop.f32.mrb[0].mxu0
        %925 = vdwg.mxu0
        %vm926 = vcmask 130048
        %v927 = vsel %vm926, %v923, 0.0
        %v928 = vadd.f32 %v843, %v927
        %v929 = vmax.f32 %v928, 0.0
        %vm930 = vcmask 179200
        %931 = vst.msk [vmem:[%s323] sm:$0xff] %vm930, %v929
        %s932 = sand.u32 %s225, 1
        %s933 = scalar_lea.sflag [#allocation3], %s932
        %s934 = sand.u32 %s225, 1
        %s935 = smul.addr %s934, 8
        %s936 = scalar_lea.vmem [#allocation2], %s935
        // Predicated region
        $region57: #{temporal_block_forward.1} parent=55 // pred_check
          %p937 = pneg %p235
        $region58: #{temporal_block_forward.1} parent=55 // pred_check_branch
          %939 = sbr.rel (%p937) target = $region60
        $region59: #{temporal_block_forward.1} parent=55 // pred_region
          %s941 = ssub.s32 128, 128
          %942 = vsyncadd %s933, %s941
          %s943 = smul.addr %s23, 128
          %s944 = scalar_lea.hbm %s9, %s943
          %s946 = sshll.u32 %s936, 4
          %s947 = int_to_ptr.vmem [resolvable:$true] %s946
          %949 = dma.vmem_to_hbm [thread:$0]  %s947, 128, %s944, %s933
        $region60: #{temporal_block_forward.1} parent=55 // pred_fallthru
          _
      $region56: #{temporal_block_forward.1} parent=5 // pred_fallthru
        _
      %p950 = scmp.le.s32.totalorder 2, %s18
      // Predicated region
      $region61: #{temporal_block_forward.1} parent=5 // pred_check
        %p951 = pneg %p950
      $region62: #{temporal_block_forward.1} parent=5 // pred_check_branch
        %953 = sbr.rel (%p951) target = $region64
      $region63: #{temporal_block_forward.1} parent=5 // pred_region
        %s954 = ssub.s32 %s18, 2
        // Predicated region
        $region65: #{temporal_block_forward.1} parent=63 // pred_check
          %p955 = pneg %p241
        $region66: #{temporal_block_forward.1} parent=63 // pred_check_branch
          %957 = sbr.rel (%p955) target = $region68
        $region67: #{temporal_block_forward.1} parent=63 // pred_region
          %s958 = sand.u32 %s226, 1
          %s959 = scalar_lea.sflag [#allocation3], %s958
          %s960 = sand.u32 %s226, 1
          %s961 = smul.addr %s960, 8
          %s962 = scalar_lea.vmem [#allocation2], %s961
          %963 = dma.done %s959, 128
        $region68: #{temporal_block_forward.1} parent=63 // pred_fallthru
          _
      $region64: #{temporal_block_forward.1} parent=5 // pred_fallthru
        _
    $region6: #{temporal_block_forward.1} parent=1 // loop_footer
      %s22 = sadd.s32 1, %s18
    $region7: #{temporal_block_forward.1} parent=1 // loop_footer_branch
      %17 = sbr.rel target = $region3
    $region8: #{temporal_block_forward.1} parent=1 // loop_exit
      _
    %964 = vsyncpa [#allocation3], 1
    %s965 = scalar_lea.sflag [#allocation3], 1
    %966 = vsyncpa %s965, 1

</llo_original>
